<compile_context>
chip_gen: v7x
topology: tpu7x:2x2x1
jax: 0.10.0
libtpu: 0.0.40
codegen_flags: <defaults>
</compile_context>

<pallas_src>
import math
from functools import partial

import jax
import jax.numpy as jnp
from jax import lax
from jax.experimental import pallas as pl
from jax.experimental.pallas import tpu as pltpu

LN_EPS = 1e-5                       # nn.LayerNorm default
MATMUL_DTYPE = jnp.bfloat16         # MXU operand dtype (f32 accumulation)
LANE = 128


def _detect_budget():
    """Generation-aware VMEM budget and row-tile caps."""
    try:
        cap = int(pltpu.get_tpu_info().vmem_capacity_bytes)
    except Exception:
        cap = 128 * 1024 * 1024
    if cap <= 64 * 1024 * 1024:                 # v7x: 64 MiB physical VMEM
        return 48 * 1024 * 1024, 512, 256
    return 100 * 1024 * 1024, 1024, 512         # v5e / v6e: 128 MiB VMEM


VMEM_LIMIT, MAX_DENSE_TILE, MAX_POST_TILE = _detect_budget()


def _round_up(x, m):
    return ((x + m - 1) // m) * m


def _compiler_params(n_axes):
    return pltpu.CompilerParams(
        dimension_semantics=("parallel",) * n_axes,
        vmem_limit_bytes=VMEM_LIMIT)


def _layernorm(x, gamma, beta):
    mu = jnp.mean(x, axis=-1, keepdims=True)
    var = jnp.mean((x - mu) ** 2, axis=-1, keepdims=True)
    return (x - mu) * lax.rsqrt(var + LN_EPS) * gamma + beta


def _pick_q_tile(s, max_tile=256):
    for t in (256, 128, 64, 32, 16, 8):
        if t <= max_tile and s % t == 0:
            return t
    return s


# ----------------------------- Pallas kernels ------------------------------

def _dense_kernel(x_ref, w_ref, b_ref, o_ref):
    # x: (TM, K) bf16, w: (K, N) bf16 (resident), b: (1, N) f32 -> o: (TM, N)
    y = jnp.dot(x_ref[...], w_ref[...],
                preferred_element_type=jnp.float32) + b_ref[...]
    o_ref[...] = y.astype(o_ref.dtype)


def _attn_kernel(q_ref, kv_ref, bias_ref, wo_ref, bo_ref, o_ref, *,
                 num_heads, head_dim, emb_dim):
    # Query-tiled attention with fused out-projection.
    #   q_ref  : (TQ, 3E) bf16 (only the Q third is used)
    #   kv_ref : (S, 3E)  bf16 (K and V thirds are used)
    #   bias   : (1, S)   f32 additive key-padding bias
    #   wo     : (E, E)   bf16 out-projection (pre-transposed)
    q_slab = q_ref[...]
    kv_slab = kv_ref[...]
    bias = bias_ref[...]
    wo = wo_ref[...]
    tq = q_slab.shape[0]
    acc = jnp.zeros((tq, emb_dim), jnp.float32)
    for h in range(num_heads):                      # static unroll over heads
        lo = h * head_dim
        q = q_slab[:, lo:lo + head_dim]
        k = kv_slab[:, emb_dim + lo:emb_dim + lo + head_dim]
        v = kv_slab[:, 2 * emb_dim + lo:2 * emb_dim + lo + head_dim]
        # q @ k^T without explicit transpose (contract axis 1 of both).
        # NOTE: 1/sqrt(head_dim) is already folded into the Q projection.
        s = lax.dot_general(q, k, (((1,), (1,)), ((), ())),
                            preferred_element_type=jnp.float32) + bias
        s = s - jnp.max(s, axis=-1, keepdims=True)
        p = jnp.exp(s)
        p = p * pl.reciprocal(jnp.sum(p, axis=-1, keepdims=True), approx=True)
        oh = jnp.dot(p.astype(MATMUL_DTYPE), v,
                     preferred_element_type=jnp.float32)
        # fused out-projection: accumulate through the head's wo row block
        acc = acc + jnp.dot(oh.astype(MATMUL_DTYPE), wo[lo:lo + head_dim, :],
                            preferred_element_type=jnp.float32)
    o_ref[...] = (acc + bo_ref[...]).astype(o_ref.dtype)   # (TQ, E) bf16


def _encoder_post_kernel(attn_ref, x_ref, g1_ref, be1_ref, w1_ref, b1_ref,
                         w2_ref, b2_ref, g2_ref, be2_ref, of_ref, ob_ref):
    # post-norm TransformerEncoderLayer tail (out-proj already fused into
    # the attention kernel), on a row tile of TM tokens:
    #   h  = LN1(x + attn)
    #   ff = GELU(h @ W1 + b1) @ W2 + b2
    #   y  = LN2(h + ff)      ->  f32 (residual) + bf16 (next QKV input)
    h = _layernorm(x_ref[...] + attn_ref[...].astype(jnp.float32),
                   g1_ref[...], be1_ref[...])
    f = jax.nn.gelu(
        jnp.dot(h.astype(MATMUL_DTYPE), w1_ref[...],
                preferred_element_type=jnp.float32) + b1_ref[...],
        approximate=False)
    f = jnp.dot(f.astype(MATMUL_DTYPE), w2_ref[...],
                preferred_element_type=jnp.float32) + b2_ref[...]
    y = _layernorm(h + f, g2_ref[...], be2_ref[...])
    of_ref[...] = y
    ob_ref[...] = y.astype(ob_ref.dtype)


def _pool_kernel(x_ref, m_ref, gf_ref, bf_ref, o_ref):
    # per-batch block: final encoder LayerNorm + masked mean pool -> (1, E)
    h = _layernorm(x_ref[...], gf_ref[...], bf_ref[...])      # (S, E) f32
    m = m_ref[...]                                            # (S, 1)
    num = jnp.sum(h * m, axis=0, keepdims=True)               # (1, E)
    den = jnp.sum(m, axis=0, keepdims=True) + 1e-8            # (1, 1)
    o_ref[...] = num / den                                    # exact division


def _mlp_head_kernel(p_ref, w1_ref, b1_ref, w2_ref, b2_ref, o_ref):
    # classifier MLP batched over all B pooled rows: (B,E) -> (B,Cp)
    c = jax.nn.gelu(
        jnp.dot(p_ref[...].astype(MATMUL_DTYPE), w1_ref[...],
                preferred_element_type=jnp.float32) + b1_ref[...],
        approximate=False)
    o_ref[...] = (jnp.dot(c.astype(MATMUL_DTYPE), w2_ref[...],
                          preferred_element_type=jnp.float32) + b2_ref[...])


# ----------------------------- pallas_call wrappers -------------------------

def pallas_dense(x, w_t, b, out_dtype, max_tile):
    # x: (M, K) bf16, w_t: (K, N) bf16, b: (1, N) f32 -> (M, N) out_dtype
    M, K = x.shape
    N = w_t.shape[1]
    tm = min(max_tile, _round_up(M, 8))
    m_pad = _round_up(M, tm)
    x_p = x if m_pad == M else jnp.pad(x, ((0, m_pad - M), (0, 0)))
    out = pl.pallas_call(
        _dense_kernel,
        out_shape=jax.ShapeDtypeStruct((m_pad, N), out_dtype),
        grid=(m_pad // tm,),
        in_specs=[pl.BlockSpec((tm, K), lambda i: (i, 0)),
                  pl.BlockSpec((K, N), lambda i: (0, 0)),    # resident weight
                  pl.BlockSpec((1, N), lambda i: (0, 0))],
        out_specs=pl.BlockSpec((tm, N), lambda i: (i, 0)),
        compiler_params=_compiler_params(1),
    )(x_p, w_t, b)
    return out if m_pad == M else out[:M]


def pallas_attention(qkv, bias, wo_t, bo, num_heads):
    # qkv: (B, S, 3E) bf16, bias: (B, 1, S) f32 -> (B, S, E) bf16
    B, S, threeE = qkv.shape
    E = threeE // 3
    Dh = E // num_heads
    TQ = _pick_q_tile(S)
    kern = partial(_attn_kernel, num_heads=num_heads, head_dim=Dh, emb_dim=E)
    return pl.pallas_call(
        kern,
        out_shape=jax.ShapeDtypeStruct((B, S, E), MATMUL_DTYPE),
        grid=(B, S // TQ),
        in_specs=[pl.BlockSpec((None, TQ, threeE), lambda b, q: (b, q, 0)),
                  pl.BlockSpec((None, S, threeE), lambda b, q: (b, 0, 0)),
                  pl.BlockSpec((None, 1, S), lambda b, q: (b, 0, 0)),
                  pl.BlockSpec((E, E), lambda b, q: (0, 0)),
                  pl.BlockSpec((1, E), lambda b, q: (0, 0))],
        out_specs=pl.BlockSpec((None, TQ, E), lambda b, q: (b, q, 0)),
        compiler_params=_compiler_params(2),
    )(qkv, qkv, bias, wo_t, bo)


def pallas_encoder_post(attn_flat, x_flat, lp, max_tile):
    # attn_flat: (M, E) bf16 (already out-projected), x_flat: (M, E) f32
    M, E = x_flat.shape
    F = lp["w1_t"].shape[1]
    tm = min(max_tile, _round_up(M, 8))
    m_pad = _round_up(M, tm)
    attn_p, x_p = attn_flat, x_flat
    if m_pad != M:
        attn_p = jnp.pad(attn_flat, ((0, m_pad - M), (0, 0)))
        x_p = jnp.pad(x_flat, ((0, m_pad - M), (0, 0)))

    def row(shape):
        return pl.BlockSpec(shape, lambda i: (i, 0))

    def res(shape):
        return pl.BlockSpec(shape, lambda i: (0, 0))

    out_f32, out_bf16 = pl.pallas_call(
        _encoder_post_kernel,
        out_shape=(jax.ShapeDtypeStruct((m_pad, E), jnp.float32),
                   jax.ShapeDtypeStruct((m_pad, E), MATMUL_DTYPE)),
        grid=(m_pad // tm,),
        in_specs=[row((tm, E)), row((tm, E)),
                  res((1, E)), res((1, E)),
                  res((E, F)), res((1, F)), res((F, E)), res((1, E)),
                  res((1, E)), res((1, E))],
        out_specs=(row((tm, E)), row((tm, E))),
        compiler_params=_compiler_params(1),
    )(attn_p, x_p, lp["ln1_w"], lp["ln1_b"], lp["w1_t"], lp["b1"],
      lp["w2_t"], lp["b2"], lp["ln2_w"], lp["ln2_b"])
    if m_pad != M:
        out_f32, out_bf16 = out_f32[:M], out_bf16[:M]
    return out_f32, out_bf16


def pallas_pool(x, mask3, gf, bf):
    # x: (B, S, E) f32, mask3: (B, S, 1) f32 -> (B, E) f32 pooled
    B, S, E = x.shape
    out = pl.pallas_call(
        _pool_kernel,
        out_shape=jax.ShapeDtypeStruct((B, 1, E), jnp.float32),
        grid=(B,),
        in_specs=[pl.BlockSpec((None, S, E), lambda b: (b, 0, 0)),
                  pl.BlockSpec((None, S, 1), lambda b: (b, 0, 0)),
                  pl.BlockSpec((1, E), lambda b: (0, 0)),
                  pl.BlockSpec((1, E), lambda b: (0, 0))],
        out_specs=pl.BlockSpec((None, 1, E), lambda b: (b, 0, 0)),
        compiler_params=_compiler_params(1),
    )(x, mask3, gf, bf)
    return out.reshape(B, E)


def pallas_mlp_head(pooled, w1_t, b1, w2_t, b2):
    # pooled: (B, E) f32 -> (B, Cp) f32 logits (lane-padded classes)
    B, E = pooled.shape
    Cp = w2_t.shape[1]
    return pl.pallas_call(
        _mlp_head_kernel,
        out_shape=jax.ShapeDtypeStruct((B, Cp), jnp.float32),
        grid=(1,),
        in_specs=[pl.BlockSpec((B, E), lambda i: (0, 0)),
                  pl.BlockSpec((E, E), lambda i: (0, 0)),
                  pl.BlockSpec((1, E), lambda i: (0, 0)),
                  pl.BlockSpec((E, Cp), lambda i: (0, 0)),
                  pl.BlockSpec((1, Cp), lambda i: (0, 0))],
        out_specs=pl.BlockSpec((B, Cp), lambda i: (0, 0)),
        compiler_params=_compiler_params(1),
    )(pooled, w1_t, b1, w2_t, b2)


# ----------------------------- parameter prep -------------------------------

def prepare_params(params, num_classes, num_heads):
    """One-time transform of PyTorch-layout (out,in) f32 weights into kernel
    layout: transposed (in,out) bf16 matmul operands, (1,N) f32 biases/LN
    params, 1/sqrt(head_dim) folded into the Q projection, classifier output
    padded to a 128-lane multiple."""
    def w(mat):
        return jnp.asarray(mat, jnp.float32).T.astype(MATMUL_DTYPE)

    def b(vec):
        return jnp.asarray(vec, jnp.float32).reshape(1, -1)

    Cp = max(LANE, _round_up(num_classes, LANE))
    wc2 = jnp.asarray(params["wc2"], jnp.float32)          # (C, E)
    E = wc2.shape[1]
    wc2_pad = jnp.zeros((Cp, E), jnp.float32).at[:num_classes].set(wc2)
    bc2_pad = jnp.zeros((Cp,), jnp.float32).at[:num_classes].set(
        jnp.asarray(params["bc2"], jnp.float32))

    prepared = dict(
        tok_emb=params["tok_emb"], pos_emb=params["pos_emb"],
        lnf_w=b(params["lnf_w"]), lnf_b=b(params["lnf_b"]),
        wc1_t=w(params["wc1"]), bc1=b(params["bc1"]),
        wc2_t=w(wc2_pad), bc2=b(bc2_pad),
        num_classes=num_classes, layers=[])

    for lp in params["layers"]:
        Eh = lp["wo"].shape[0]
        scale = 1.0 / math.sqrt(Eh // num_heads)
        w_in = jnp.asarray(lp["w_in"], jnp.float32)        # (3E, E) torch layout
        w_in = w_in.at[:Eh].multiply(scale)                # fold scale into Q rows
        b_in = jnp.asarray(lp["b_in"], jnp.float32)
        b_in = b_in.at[:Eh].multiply(scale)
        prepared["layers"].append(dict(
            w_in_t=w(w_in), b_in=b(b_in),
            wo_t=w(lp["wo"]), bo=b(lp["bo"]),
            ln1_w=b(lp["ln1_w"]), ln1_b=b(lp["ln1_b"]),
            w1_t=w(lp["w1"]), b1=b(lp["b1"]),
            w2_t=w(lp["w2"]), b2=b(lp["b2"]),
            ln2_w=b(lp["ln2_w"]), ln2_b=b(lp["ln2_b"])))
    return prepared


# ----------------------------- model forward --------------------------------

def encoder_classifier_forward(prepared, num_heads, token_ids, attention_mask):
    B, S = token_ids.shape
    E = prepared["tok_emb"].shape[1]
    mask_f = attention_mask.astype(jnp.float32)

    # TODO(synk): the custom `Embedding` module is not given in the reference
    # snippet; assumed: token embedding (padding_idx=0) + sinusoidal positional
    # encoding, zeroed at padded positions, dropout = identity (eval).
    x = prepared["tok_emb"][token_ids] + prepared["pos_emb"][:S][None]
    x = x * mask_f[..., None]

    # key-padding mask -> additive bias (0 keep, -1e30 pad)
    attn_bias = jnp.where(mask_f > 0, 0.0, -1e30).reshape(B, 1, S).astype(jnp.float32)

    x_f32 = x.reshape(B * S, E)
    x_bf16 = x_f32.astype(MATMUL_DTYPE)

    for lp in prepared["layers"]:
        # fused QKV projection (row-tiled Pallas dense, bf16 in, bf16 out)
        qkv = pallas_dense(x_bf16, lp["w_in_t"], lp["b_in"],
                           out_dtype=MATMUL_DTYPE,
                           max_tile=MAX_DENSE_TILE).reshape(B, S, 3 * E)
        # query-tiled attention with fused out-projection, bf16 output
        attn = pallas_attention(qkv, attn_bias, lp["wo_t"], lp["bo"], num_heads)
        # residual + LN1 + FFN + residual + LN2 (fused, row-tiled, dual output)
        x_f32, x_bf16 = pallas_encoder_post(attn.reshape(B * S, E), x_f32, lp,
                                            max_tile=MAX_POST_TILE)

    # final encoder LayerNorm + masked mean pooling (per batch), then one
    # batched classifier MLP over all pooled rows.
    pooled = pallas_pool(x_f32.reshape(B, S, E), mask_f.reshape(B, S, 1),
                         prepared["lnf_w"], prepared["lnf_b"])
    logits_pad = pallas_mlp_head(pooled, prepared["wc1_t"], prepared["bc1"],
                                 prepared["wc2_t"], prepared["bc2"])
    return logits_pad[:, :prepared["num_classes"]]


# ----------------------------- parameter init -------------------------------

def init_params(key, vocab_size, num_classes, E, num_layers, max_len):
    def xavier(k, shape):
        fan_out, fan_in = shape
        lim = math.sqrt(6.0 / (fan_in + fan_out))
        return jax.random.uniform(k, shape, jnp.float32, -lim, lim)

    keys = jax.random.split(key, 4 + num_layers)
    tok = jax.random.normal(keys[0], (vocab_size, E), jnp.float32) * 0.02
    tok = tok.at[0].set(0.0)  # padding_idx = 0

    pos = jnp.arange(max_len, dtype=jnp.float32)[:, None]
    div = jnp.exp(jnp.arange(0, E, 2, dtype=jnp.float32) * (-math.log(10000.0) / E))
    pe = jnp.zeros((max_len, E), jnp.float32)
    pe = pe.at[:, 0::2].set(jnp.sin(pos * div))
    pe = pe.at[:, 1::2].set(jnp.cos(pos * div))

    layers = []
    F = 4 * E
    for i in range(num_layers):
        lk = jax.random.split(keys[3 + i], 4)
        layers.append(dict(
            w_in=xavier(lk[0], (3 * E, E)), b_in=jnp.zeros((3 * E,), jnp.float32),
            wo=xavier(lk[1], (E, E)), bo=jnp.zeros((E,), jnp.float32),
            ln1_w=jnp.ones((E,), jnp.float32), ln1_b=jnp.zeros((E,), jnp.float32),
            w1=xavier(lk[2], (F, E)), b1=jnp.zeros((F,), jnp.float32),
            w2=xavier(lk[3], (E, F)), b2=jnp.zeros((E,), jnp.float32),
            ln2_w=jnp.ones((E,), jnp.float32), ln2_b=jnp.zeros((E,), jnp.float32),
        ))

    return dict(
        tok_emb=tok, pos_emb=pe, layers=layers,
        lnf_w=jnp.ones((E,), jnp.float32), lnf_b=jnp.zeros((E,), jnp.float32),
        wc1=xavier(keys[1], (E, E)), bc1=jnp.zeros((E,), jnp.float32),
        wc2=xavier(keys[2], (num_classes, E)),
        bc2=jnp.zeros((num_classes,), jnp.float32),
    )


# ----------------------------- main ------------------------------------------

if __name__ == "__main__":
    VOCAB, NUM_CLASSES = 50, 5
    E, LAYERS, HEADS, MAX_LEN = 32, 2, 4, 16
    B, S = 2, 8

    key = jax.random.PRNGKey(0)
    pkey, dkey = jax.random.split(key)
    params = init_params(pkey, VOCAB, NUM_CLASSES, E, LAYERS, MAX_LEN)
    prepared = prepare_params(params, NUM_CLASSES, HEADS)

    token_ids = jax.random.randint(dkey, (B, S), 1, VOCAB, dtype=jnp.int32)
    attention_mask = jnp.array([[1, 1, 1, 1, 1, 1, 0, 0],
                                [1, 1, 1, 1, 0, 0, 0, 0]], dtype=jnp.int32)
    token_ids = token_ids * attention_mask  # padded positions -> padding_idx 0

    logits = encoder_classifier_forward(prepared, HEADS, token_ids, attention_mask)
    jax.block_until_ready(logits)
    assert logits.shape == (B, NUM_CLASSES)
    assert bool(jnp.all(jnp.isfinite(logits)))
    print("KERNEL_OK")
</pallas_src>

<mosaic_0001>
module attributes {stable_mosaic.version = 11 : i64} {
  func.func @_dense_kernel(%arg0: i32, %arg1: memref<16x32xbf16, #tpu.memory_space<vmem>>, %arg2: memref<32x96xbf16, #tpu.memory_space<vmem>>, %arg3: memref<1x96xf32, #tpu.memory_space<vmem>>, %arg4: memref<16x96xbf16, #tpu.memory_space<vmem>>) attributes {dimension_semantics = [#tpu.dimension_semantics<parallel>], iteration_bounds = array<i64: 1>, scalar_prefetch = 0 : i64, scratch_operands = 0 : i64, tpu.core_type = #tpu.core_type<tc>, window_params = [{transform_indices = @transform_0, window_bounds = array<i64: 16, 32>}, {pipeline_mode = #tpu.pipeline_mode<synchronous>, transform_indices = @transform_1, window_bounds = array<i64: 32, 96>}, {pipeline_mode = #tpu.pipeline_mode<synchronous>, transform_indices = @transform_2, window_bounds = array<i64: 1, 96>}, {transform_indices = @transform_3, window_bounds = array<i64: 16, 96>}]} {
    %c0 = arith.constant 0 : index
    %c0_0 = arith.constant 0 : index
    %0 = vector.load %arg1[%c0, %c0_0] : memref<16x32xbf16, #tpu.memory_space<vmem>>, vector<16x32xbf16>
    %c0_1 = arith.constant 0 : index
    %c0_2 = arith.constant 0 : index
    %1 = vector.load %arg2[%c0_1, %c0_2] : memref<32x96xbf16, #tpu.memory_space<vmem>>, vector<32x96xbf16>
    %cst = arith.constant dense<0.000000e+00> : vector<16x96xf32>
    %2 = tpu.matmul %0, %1, %cst {dimension_numbers = #tpu.dot_dimension_numbers<[1], [0], [0], [1], [0, 0, 1, 1], [], []>} : vector<16x32xbf16>, vector<32x96xbf16>, vector<16x96xf32> -> vector<16x96xf32>
    %c0_3 = arith.constant 0 : index
    %c0_4 = arith.constant 0 : index
    %3 = vector.load %arg3[%c0_3, %c0_4] : memref<1x96xf32, #tpu.memory_space<vmem>>, vector<1x96xf32>
    %4 = vector.broadcast %3 : vector<1x96xf32> to vector<16x96xf32>
    %5 = arith.addf %2, %4 : vector<16x96xf32>
    %6 = arith.truncf %5 : vector<16x96xf32> to vector<16x96xbf16>
    %c0_5 = arith.constant 0 : index
    %c0_6 = arith.constant 0 : index
    %7 = vector.load %arg4[%c0_5, %c0_6] : memref<16x96xbf16, #tpu.memory_space<vmem>>, vector<16x96xbf16>
    tpu.vector_store %arg4[%c0_5, %c0_6], %6 {strides = array<i32>} : memref<16x96xbf16, #tpu.memory_space<vmem>>, vector<16x96xbf16>,
    return
  }
  func.func @transform_0(%arg0: i32) -> (i32, i32) {
    %c0_i32 = arith.constant 0 : i32
    %c0_i32_0 = arith.constant 0 : i32
    return %arg0, %c0_i32 : i32, i32
  }
  func.func @transform_1(%arg0: i32) -> (i32, i32) {
    %c0_i32 = arith.constant 0 : i32
    %c0_i32_0 = arith.constant 0 : i32
    %c0_i32_1 = arith.constant 0 : i32
    return %c0_i32, %c0_i32_0 : i32, i32
  }
  func.func @transform_2(%arg0: i32) -> (i32, i32) {
    %c0_i32 = arith.constant 0 : i32
    %c0_i32_0 = arith.constant 0 : i32
    %c0_i32_1 = arith.constant 0 : i32
    return %c0_i32, %c0_i32_0 : i32, i32
  }
  func.func @transform_3(%arg0: i32) -> (i32, i32) {
    %c0_i32 = arith.constant 0 : i32
    %c0_i32_0 = arith.constant 0 : i32
    return %arg0, %c0_i32 : i32, i32
  }
}

</mosaic_0001>

<llo_original>
// kernel: tpu_custom_call.1
$region0: #{tpu_custom_call.1}
  #allocation0 [shape = 'u32[]', space=smem, size = 0x4, offset = 0x4, fixed_abs, tag = 'smem constant byte address 0x4 - core index']
  #allocation1 [shape = 'u32[144,128]{1,0:T(1,128)}', space=vmem, size = 0x12000, scoped, tag = 'internal scratch']
  %s0 = inlined_call_operand.hbm [shape: bf16[16,32], index: 0, kind: input, shape index: {}]
  %s1 = inlined_call_operand.hbm [shape: bf16[32,96], index: 1, kind: input, shape index: {}]
  %s2 = inlined_call_operand.hbm [shape: f32[1,96], index: 2, kind: input, shape index: {}]
  %s3 = inlined_call_operand.hbm [shape: bf16[16,96], index: 3, kind: output, shape index: {}]
  %s4 = sld [smem:[#allocation0]]
  $region34: #{tpu_custom_call.1} parent=0
    _
  %s6 = ssub.s32 1, %s4
  %s7 = scalar_select 0, %s6, %s4
  $region1: #{tpu_custom_call.1} parent=0
    #allocation2 [shape = 'u8[4096]{0}', space=vmem, size = 0x1000, scoped, tag = 'input window, operand 0, single buffered']
    #allocation3 [shape = 's32[1]{0}', space=sflag, size = 0x4, scoped, tag = 'scoped memory for tpu_custom_call.1']
    #allocation4 [shape = 's32[1]{0}', space=sflag, size = 0x4, scoped, tag = 'scoped memory for tpu_custom_call.1']
    #allocation5 [shape = 'u8[8192]{0}', space=vmem, size = 0x2000, scoped, tag = 'input window, operand 1, single buffered']
    #allocation6 [shape = 's32[1]{0}', space=sflag, size = 0x4, scoped, tag = 'scoped memory for tpu_custom_call.1']
    #allocation7 [shape = 'u8[512]{0}', space=vmem, size = 0x400, scoped, tag = 'input window, operand 2, single buffered']
    #allocation8 [shape = 'u8[4096]{0}', space=vmem, size = 0x1000, scoped, tag = 'output window, operand 0, single buffered']
    %8 = vsyncpa [#allocation3], 0
    %9 = vsyncpa [#allocation6], 0
    %10 = vsyncpa [#allocation4], 0
    // Predicated region
    $region2: #{tpu_custom_call.1} parent=1 // pred_check
      _
    $region3: #{tpu_custom_call.1} parent=1 // pred_check_branch
      %12 = sbr.rel (0) target = $region5
    $region4: #{tpu_custom_call.1} parent=1 // pred_region
      %s14 = ssub.s32 128, 128
      %15 = vsyncadd [#allocation3], %s14
      %s16 = sshll.u32 [#allocation2], 4
      %s17 = int_to_ptr.vmem [resolvable:$true] %s16
      %22 = dma.hbm_to_vmem [thread:$0]  %s0, 128, %s17, [#allocation3], 64, 64, 4
    $region5: #{tpu_custom_call.1} parent=1 // pred_fallthru
      _
    // Predicated region
    $region6: #{tpu_custom_call.1} parent=1 // pred_check
      _
    $region7: #{tpu_custom_call.1} parent=1 // pred_check_branch
      %24 = sbr.rel (0) target = $region9
    $region8: #{tpu_custom_call.1} parent=1 // pred_region
      %s26 = ssub.s32 256, 256
      %27 = vsyncadd [#allocation6], %s26
      %s28 = sshll.u32 [#allocation5], 4
      %s29 = int_to_ptr.vmem [resolvable:$true] %s28
      %34 = dma.hbm_to_vmem [thread:$0]  %s1, 256, %s29, [#allocation6], 64, 64, 4
    $region9: #{tpu_custom_call.1} parent=1 // pred_fallthru
      _
    // Predicated region
    $region10: #{tpu_custom_call.1} parent=1 // pred_check
      _
    $region11: #{tpu_custom_call.1} parent=1 // pred_check_branch
      %36 = sbr.rel (0) target = $region13
    $region12: #{tpu_custom_call.1} parent=1 // pred_region
      %s38 = ssub.s32 16, 16
      %39 = vsyncadd [#allocation6], %s38
      %s41 = sshll.u32 [#allocation7], 4
      %s42 = int_to_ptr.vmem [resolvable:$true] %s41
      %44 = dma.hbm_to_vmem [thread:$0]  %s2, 16, %s42, [#allocation6]
    $region13: #{tpu_custom_call.1} parent=1 // pred_fallthru
      _
    // Predicated region
    $region14: #{tpu_custom_call.1} parent=1 // pred_check
      _
    $region15: #{tpu_custom_call.1} parent=1 // pred_check_branch
      %46 = sbr.rel (0) target = $region17
    $region16: #{tpu_custom_call.1} parent=1 // pred_region
      %47 = dma.done [#allocation3], 128
    $region17: #{tpu_custom_call.1} parent=1 // pred_fallthru
      _
    // Predicated region
    $region18: #{tpu_custom_call.1} parent=1 // pred_check
      _
    $region19: #{tpu_custom_call.1} parent=1 // pred_check_branch
      %49 = sbr.rel (0) target = $region21
    $region20: #{tpu_custom_call.1} parent=1 // pred_region
      %50 = dma.done [#allocation6], 256
    $region21: #{tpu_custom_call.1} parent=1 // pred_fallthru
      _
    // Predicated region
    $region22: #{tpu_custom_call.1} parent=1 // pred_check
      _
    $region23: #{tpu_custom_call.1} parent=1 // pred_check_branch
      %52 = sbr.rel (0) target = $region25
    $region24: #{tpu_custom_call.1} parent=1 // pred_region
      %53 = dma.done [#allocation6], 16
    $region25: #{tpu_custom_call.1} parent=1 // pred_fallthru
      _
    %v55 = vld [vmem:[#allocation2] sm:$0xf]
    %v56 = vld [vmem:[#allocation2 + $0x4] sm:$0xf]
    %v57 = vld [vmem:[#allocation5] sm:$0xf]
    %v58 = vld [vmem:[#allocation5 + $0x4] sm:$0xf]
    %v59 = vld [vmem:[#allocation5 + $0x8] sm:$0xf]
    %v60 = vld [vmem:[#allocation5 + $0xc] sm:$0xf]
    %v61 = vld [vmem:[#allocation7] sm:$0x1]
    %v63 = vlaneseq
    %v64 = vshrl.u32 %v63, 7
    %v65 = vsub.s32 0, %v64
    %v66 = vrot.slane %v61, %v65
    %v70 = vunpack.c.l.b16 %v55
    %v71 = vunpack.c.l.b16 %v56
    %v72 = vpack.c.b16 %v71, %v70
    %v77 = vunpack.c.l.b16 %v57
    %v78 = vunpack.c.l.b16 %v58
    %v79 = vunpack.c.l.b16 %v59
    %v80 = vunpack.c.l.b16 %v60
    %v81 = vpack.c.b16 %v78, %v77
    %v82 = vpack.c.b16 %v80, %v79
    %vm85 = vcmask 261120
    %v87 = vsel %vm85, %v72, 0
    %89 = vmatprep.subr.bf16.mxu0 0
    %90 = vmatpush1.bf16.msra.mxu0 %v81
    %91 = vmatprep.subr.bf16.mxu0 0
    %92 = vmatpush1.bf16.msra.mxu0 %v82
    %93 = vmatprep.subr.bf16.mxu0 0
    %94 = vmatpush1.bf16.msra.mxu0 0
    %95 = vmatprep.subr.bf16.mxu0 0
    %96 = vmatpush1.bf16.msra.mxu0 0
    %97 = vmatprep.subr.bf16.mxu0 0
    %98 = vmatpush1.bf16.msra.mxu0 0
    %99 = vmatprep.subr.bf16.mxu0 0
    %100 = vmatpush1.bf16.msra.mxu0 0
    %101 = vmatprep.subr.bf16.mxu0 0
    %102 = vmatpush1.bf16.msra.mxu0 0
    %103 = vmatprep.subr.bf16.mxu0 0
    %104 = vmatpush1.bf16.msra.mxu0 0
    %105 = vmatprep.subr.bf16.mxu0 0
    %106 = vmatpush1.bf16.msra.mxu0 0
    %107 = vmatprep.subr.bf16.mxu0 0
    %108 = vmatpush1.bf16.msra.mxu0 0
    %109 = vmatprep.subr.bf16.mxu0 0
    %110 = vmatpush1.bf16.msra.mxu0 0
    %111 = vmatprep.subr.bf16.mxu0 0
    %112 = vmatpush1.bf16.msra.mxu0 0
    %113 = vmatprep.subr.bf16.mxu0 0
    %114 = vmatpush1.bf16.msra.mxu0 0
    %115 = vmatprep.subr.bf16.mxu0 0
    %116 = vmatpush1.bf16.msra.mxu0 0
    %117 = vmatprep.subr.bf16.mxu0 0
    %118 = vmatpush1.bf16.msra.mxu0 0
    %119 = vmatprep.subr.bf16.mxu0 0
    %120 = vmatpush1.bf16.msra.mxu0 0
    %121 = vmatprep.mubr.bf16.mxu0 0
    %122 = vmatmul.mubr.bf16.gmra.mrb[0].mxu0 %v87
    %v123 = vpop.f32.mrb[0].mxu0
    %v124 = vadd.f32 %v66, %v123
    %v125 = vpop.f32.mrb[0].mxu0
    %v126 = vpop.f32.mrb[0].mxu0
    %v127 = vadd.f32 %v66, %v126
    %v128 = vpop.f32.mrb[0].mxu0
    %129 = vdwg.mxu0
    %v130 = vpack.c.bf16 %v127, %v124
    %v132 = vunpack.c.l.b16 %v130
    %v133 = vunpack.c.h.b16 %v130
    %v134 = vpack.c.b16 %v132, %v132
    %v135 = vpack.c.b16 %v133, %v133
    %vm138 = vcmask 781312
    %139 = vst.msk [vmem:[#allocation8] sm:$0xf] %vm138, %v134
    %140 = vst.msk [vmem:[#allocation8 + $0x4] sm:$0xf] %vm138, %v135
    // Predicated region
    $region26: #{tpu_custom_call.1} parent=1 // pred_check
      _
    $region27: #{tpu_custom_call.1} parent=1 // pred_check_branch
      %142 = sbr.rel (0) target = $region29
    $region28: #{tpu_custom_call.1} parent=1 // pred_region
      %s144 = ssub.s32 128, 128
      %145 = vsyncadd [#allocation4], %s144
      %s146 = sshll.u32 [#allocation8], 4
      %s147 = int_to_ptr.vmem [resolvable:$true] %s146
      %152 = dma.vmem_to_hbm [thread:$0]  %s147, 128, %s3, [#allocation4], 64, 64, 4
    $region29: #{tpu_custom_call.1} parent=1 // pred_fallthru
      _
    // Predicated region
    $region30: #{tpu_custom_call.1} parent=1 // pred_check
      _
    $region31: #{tpu_custom_call.1} parent=1 // pred_check_branch
      %154 = sbr.rel (0) target = $region33
    $region32: #{tpu_custom_call.1} parent=1 // pred_region
      %155 = dma.done [#allocation4], 128
    $region33: #{tpu_custom_call.1} parent=1 // pred_fallthru
      _
    %156 = vsyncpa [#allocation3], 1
    %157 = vsyncpa [#allocation6], 1
    %158 = vsyncpa [#allocation4], 1

</llo_original>
